<compile_context>
chip_gen: v7x
topology: tpu7x:2x2x1
jax: 0.10.0
libtpu: 0.0.40
codegen_flags: <defaults>
</compile_context>

<pallas_src>
import math

import jax
import jax.numpy as jnp
from jax.experimental import pallas as pl
from jax.experimental.pallas import tpu as pltpu


def token_embedding_kernel(x_ref, w_ref, b_ref, o_ref):
    # x_ref : (TM, 3*c_in)   w_ref : (3*c_in, D_pad)
    # b_ref : (1, D_pad)     o_ref : (TM, D_pad)
    acc = jnp.dot(x_ref[...], w_ref[...], preferred_element_type=jnp.float32)
    o_ref[...] = (acc + b_ref[...].astype(jnp.float32)).astype(o_ref.dtype)


def token_embedding(x, weight, bias, *, row_tile=512):
    """x: (B, L, c_in); weight: (d_model, c_in, 3) [PyTorch layout]; bias: (d_model,)."""
    B, L, c_in = x.shape
    d_model = weight.shape[0]
    dtype = x.dtype

    # --- wrapper-side tap fusion (one-time, outside the kernel) -------------
    # Circular shifts along L, then concat along channels -> contraction K=3*c_in.
    # NOTE: shift +1 pairs with tap k=0, shift -1 with tap k=2 (cross-correlation).
    x_m1 = jnp.roll(x, 1, axis=1)
    x_p1 = jnp.roll(x, -1, axis=1)
    x_cat = jnp.concatenate([x_m1, x, x_p1], axis=-1)          # (B, L, 3*c_in)

    K = 3 * c_in
    M = B * L
    x_cat = x_cat.reshape(M, K)
    # TODO(synk): K (=3*c_in) sits on the 128-lane axis and is DMA'd padded;
    # acceptable here since the x read is tiny compared to the d_model output write.

    # Conv1d weight (d_model, c_in, 3) -> (3, c_in, d_model) -> (3*c_in, d_model).
    w = jnp.transpose(weight, (2, 1, 0)).reshape(K, d_model)

    # --- lane-dense output: pad d_model up to a multiple of 128 -------------
    D_pad = ((d_model + 127) // 128) * 128
    if D_pad != d_model:
        w = jnp.pad(w, ((0, 0), (0, D_pad - d_model)))
        b = jnp.pad(bias, (0, D_pad - d_model)).reshape(1, D_pad)
    else:
        b = bias.reshape(1, D_pad)
    b = b.astype(dtype) if dtype == jnp.float32 else b          # keep bias f32-capable

    # --- row tiling ----------------------------------------------------------
    # Sublane-aligned tile; sized so double-buffered in+out blocks stay well
    # under v7x's 32 MiB default scoped VMEM (512*D_pad*4B out-tile ~= 2 MiB
    # even at d_model=1024).
    TM = min(row_tile, ((M + 7) // 8) * 8)
    M_pad = ((M + TM - 1) // TM) * TM
    if M_pad != M:
        x_cat = jnp.pad(x_cat, ((0, M_pad - M), (0, 0)))

    grid = (M_pad // TM,)

    out = pl.pallas_call(
        token_embedding_kernel,
        out_shape=jax.ShapeDtypeStruct((M_pad, D_pad), dtype),
        grid_spec=pltpu.PrefetchScalarGridSpec(
            num_scalar_prefetch=0,
            grid=grid,
            in_specs=[
                pl.BlockSpec((TM, K), lambda i: (i, 0)),        # row tile of x_cat
                pl.BlockSpec((K, D_pad), lambda i: (0, 0)),     # whole fused weight
                pl.BlockSpec((1, D_pad), lambda i: (0, 0)),     # bias
            ],
            out_specs=pl.BlockSpec((TM, D_pad), lambda i: (i, 0)),
        ),
        compiler_params=pltpu.CompilerParams(
            dimension_semantics=("parallel",)),                 # megacore over row tiles
    )(x_cat, w, b)

    return out[:M, :d_model].reshape(B, L, d_model)


def init_params(key, c_in, d_model, kernel_size=3):
    """Deterministic parameter init matching nn.Conv1d + kaiming_normal_."""
    k_w, k_b = jax.random.split(key)
    fan_in = c_in * kernel_size
    # kaiming_normal_(mode='fan_in', nonlinearity='leaky_relu'), slope=0.01
    gain = math.sqrt(2.0 / (1.0 + 0.01 ** 2))
    std = gain / math.sqrt(fan_in)
    weight = std * jax.random.normal(k_w, (d_model, c_in, kernel_size),
                                     dtype=jnp.float32)
    # nn.Conv1d default bias init: U(-1/sqrt(fan_in), 1/sqrt(fan_in))
    bound = 1.0 / math.sqrt(fan_in)
    bias = jax.random.uniform(k_b, (d_model,), minval=-bound, maxval=bound,
                              dtype=jnp.float32)
    return weight, bias


def token_embedding_ref(x, weight, bias):
    """Pure-JAX reference (same math, no Pallas)."""
    w = jnp.transpose(weight, (2, 1, 0))                        # (3, c_in, d_model)
    x_m1 = jnp.roll(x, 1, axis=1)
    x_p1 = jnp.roll(x, -1, axis=1)
    y = (jnp.einsum("blc,cd->bld", x_m1, w[0])
         + jnp.einsum("blc,cd->bld", x, w[1])
         + jnp.einsum("blc,cd->bld", x_p1, w[2]))
    return y + bias[None, None, :]


if __name__ == "__main__":
    key = jax.random.PRNGKey(0)

    # --- small shapes consistent with the module's forward ------------------
    B, L, C_IN, D_MODEL = 2, 8, 4, 32
    k_x, k_p, k_x2, k_p2 = jax.random.split(key, 4)
    x = jax.random.normal(k_x, (B, L, C_IN), dtype=jnp.float32)
    weight, bias = init_params(k_p, C_IN, D_MODEL)

    out = jax.block_until_ready(token_embedding(x, weight, bias))
    ref = token_embedding_ref(x, weight, bias)
    assert out.shape == (B, L, D_MODEL)
    assert jnp.allclose(out, ref, atol=1e-4, rtol=1e-4), "mismatch vs reference (small)"

    # --- second config exercising multiple row tiles + M/d_model padding ----
    B2, L2, C2, D2 = 3, 100, 7, 96
    x2 = jax.random.normal(k_x2, (B2, L2, C2), dtype=jnp.float32)
    w2, b2 = init_params(k_p2, C2, D2)
    out2 = jax.block_until_ready(token_embedding(x2, w2, b2, row_tile=128))
    ref2 = token_embedding_ref(x2, w2, b2)
    assert out2.shape == (B2, L2, D2)
    assert jnp.allclose(out2, ref2, atol=1e-4, rtol=1e-4), "mismatch vs reference (tiled)"

    print("KERNEL_OK")
</pallas_src>

<mosaic_0001>
module attributes {stable_mosaic.version = 11 : i64} {
  func.func @token_embedding_kernel(%arg0: i32, %arg1: memref<16x12xf32, #tpu.memory_space<vmem>>, %arg2: memref<12x128xf32, #tpu.memory_space<vmem>>, %arg3: memref<1x128xf32, #tpu.memory_space<vmem>>, %arg4: memref<16x128xf32, #tpu.memory_space<vmem>>) attributes {dimension_semantics = [#tpu.dimension_semantics<parallel>], iteration_bounds = array<i64: 1>, scalar_prefetch = 0 : i64, scratch_operands = 0 : i64, tpu.core_type = #tpu.core_type<tc>, window_params = [{transform_indices = @transform_0, window_bounds = array<i64: 16, 12>}, {pipeline_mode = #tpu.pipeline_mode<synchronous>, transform_indices = @transform_1, window_bounds = array<i64: 12, 128>}, {pipeline_mode = #tpu.pipeline_mode<synchronous>, transform_indices = @transform_2, window_bounds = array<i64: 1, 128>}, {transform_indices = @transform_3, window_bounds = array<i64: 16, 128>}]} {
    %c0 = arith.constant 0 : index
    %c0_0 = arith.constant 0 : index
    %0 = vector.load %arg1[%c0, %c0_0] : memref<16x12xf32, #tpu.memory_space<vmem>>, vector<16x12xf32>
    %c0_1 = arith.constant 0 : index
    %c0_2 = arith.constant 0 : index
    %1 = vector.load %arg2[%c0_1, %c0_2] : memref<12x128xf32, #tpu.memory_space<vmem>>, vector<12x128xf32>
    %cst = arith.constant dense<0.000000e+00> : vector<16x128xf32>
    %2 = tpu.matmul %0, %1, %cst {dimension_numbers = #tpu.dot_dimension_numbers<[1], [0], [0], [1], [0, 0, 1, 1], [], []>} : vector<16x12xf32>, vector<12x128xf32>, vector<16x128xf32> -> vector<16x128xf32>
    %c0_3 = arith.constant 0 : index
    %c0_4 = arith.constant 0 : index
    %3 = vector.load %arg3[%c0_3, %c0_4] : memref<1x128xf32, #tpu.memory_space<vmem>>, vector<1x128xf32>
    %4 = vector.broadcast %3 : vector<1x128xf32> to vector<16x128xf32>
    %5 = arith.addf %2, %4 : vector<16x128xf32>
    %c0_5 = arith.constant 0 : index
    %c0_6 = arith.constant 0 : index
    %6 = vector.load %arg4[%c0_5, %c0_6] : memref<16x128xf32, #tpu.memory_space<vmem>>, vector<16x128xf32>
    tpu.vector_store %arg4[%c0_5, %c0_6], %5 {strides = array<i32>} : memref<16x128xf32, #tpu.memory_space<vmem>>, vector<16x128xf32>,
    return
  }
  func.func @transform_0(%arg0: i32) -> (i32, i32) {
    %c0_i32 = arith.constant 0 : i32
    %c0_i32_0 = arith.constant 0 : i32
    return %arg0, %c0_i32 : i32, i32
  }
  func.func @transform_1(%arg0: i32) -> (i32, i32) {
    %c0_i32 = arith.constant 0 : i32
    %c0_i32_0 = arith.constant 0 : i32
    %c0_i32_1 = arith.constant 0 : i32
    return %c0_i32, %c0_i32_0 : i32, i32
  }
  func.func @transform_2(%arg0: i32) -> (i32, i32) {
    %c0_i32 = arith.constant 0 : i32
    %c0_i32_0 = arith.constant 0 : i32
    %c0_i32_1 = arith.constant 0 : i32
    return %c0_i32, %c0_i32_0 : i32, i32
  }
  func.func @transform_3(%arg0: i32) -> (i32, i32) {
    %c0_i32 = arith.constant 0 : i32
    %c0_i32_0 = arith.constant 0 : i32
    return %arg0, %c0_i32 : i32, i32
  }
}

</mosaic_0001>

<llo_original>
// kernel: tpu_custom_call.1
$region0: #{tpu_custom_call.1}
  #allocation0 [shape = 'u32[]', space=smem, size = 0x4, offset = 0x4, fixed_abs, tag = 'smem constant byte address 0x4 - core index']
  #allocation1 [shape = 'u32[144,128]{1,0:T(1,128)}', space=vmem, size = 0x12000, scoped, tag = 'internal scratch']
  %s0 = inlined_call_operand.hbm [shape: f32[16,12], index: 0, kind: input, shape index: {}]
  %s1 = inlined_call_operand.hbm [shape: f32[12,128], index: 1, kind: input, shape index: {}]
  %s2 = inlined_call_operand.vmem [shape: f32[1,128], index: 2, kind: input, shape index: {}]
  %s3 = inlined_call_operand.hbm [shape: f32[16,128], index: 3, kind: output, shape index: {}]
  %s4 = sld [smem:[#allocation0]]
  $region30: #{tpu_custom_call.1} parent=0
    _
  %s6 = ssub.s32 1, %s4
  %s7 = scalar_select 0, %s6, %s4
  $region1: #{tpu_custom_call.1} parent=0
    #allocation2 [shape = 'u8[8192]{0}', space=vmem, size = 0x2000, scoped, tag = 'input window, operand 0, single buffered']
    #allocation3 [shape = 's32[1]{0}', space=sflag, size = 0x4, scoped, tag = 'scoped memory for tpu_custom_call.1']
    #allocation4 [shape = 's32[1]{0}', space=sflag, size = 0x4, scoped, tag = 'scoped memory for tpu_custom_call.1']
    #allocation5 [shape = 'u8[8192]{0}', space=vmem, size = 0x2000, scoped, tag = 'input window, operand 1, single buffered']
    #allocation6 [shape = 's32[1]{0}', space=sflag, size = 0x4, scoped, tag = 'scoped memory for tpu_custom_call.1']
    #allocation7 [shape = 'u8[8192]{0}', space=vmem, size = 0x2000, scoped, tag = 'output window, operand 0, single buffered']
    %8 = vsyncpa [#allocation3], 0
    %9 = vsyncpa [#allocation6], 0
    %10 = vsyncpa [#allocation4], 0
    // Predicated region
    $region2: #{tpu_custom_call.1} parent=1 // pred_check
      _
    $region3: #{tpu_custom_call.1} parent=1 // pred_check_branch
      %12 = sbr.rel (0) target = $region5
    $region4: #{tpu_custom_call.1} parent=1 // pred_region
      %s14 = ssub.s32 256, 256
      %15 = vsyncadd [#allocation3], %s14
      %s16 = sshll.u32 [#allocation2], 4
      %s17 = int_to_ptr.vmem [resolvable:$true] %s16
      %22 = dma.hbm_to_vmem [thread:$0]  %s0, 256, %s17, [#allocation3], 128, 128, 8
    $region5: #{tpu_custom_call.1} parent=1 // pred_fallthru
      _
    // Predicated region
    $region6: #{tpu_custom_call.1} parent=1 // pred_check
      _
    $region7: #{tpu_custom_call.1} parent=1 // pred_check_branch
      %24 = sbr.rel (0) target = $region9
    $region8: #{tpu_custom_call.1} parent=1 // pred_region
      %s26 = ssub.s32 256, 256
      %27 = vsyncadd [#allocation6], %s26
      %s28 = sshll.u32 [#allocation5], 4
      %s29 = int_to_ptr.vmem [resolvable:$true] %s28
      %34 = dma.hbm_to_vmem [thread:$0]  %s1, 256, %s29, [#allocation6], 128, 128, 8
    $region9: #{tpu_custom_call.1} parent=1 // pred_fallthru
      _
    // Predicated region
    $region10: #{tpu_custom_call.1} parent=1 // pred_check
      _
    $region11: #{tpu_custom_call.1} parent=1 // pred_check_branch
      %36 = sbr.rel (0) target = $region13
    $region12: #{tpu_custom_call.1} parent=1 // pred_region
      _
    $region13: #{tpu_custom_call.1} parent=1 // pred_fallthru
      _
    // Predicated region
    $region14: #{tpu_custom_call.1} parent=1 // pred_check
      _
    $region15: #{tpu_custom_call.1} parent=1 // pred_check_branch
      %38 = sbr.rel (0) target = $region17
    $region16: #{tpu_custom_call.1} parent=1 // pred_region
      %39 = dma.done [#allocation3], 256
    $region17: #{tpu_custom_call.1} parent=1 // pred_fallthru
      _
    // Predicated region
    $region18: #{tpu_custom_call.1} parent=1 // pred_check
      _
    $region19: #{tpu_custom_call.1} parent=1 // pred_check_branch
      %41 = sbr.rel (0) target = $region21
    $region20: #{tpu_custom_call.1} parent=1 // pred_region
      %42 = dma.done [#allocation6], 256
    $region21: #{tpu_custom_call.1} parent=1 // pred_fallthru
      _
    %v43 = vld [vmem:[#allocation2] sm:$0xff]
    %v44 = vld [vmem:[#allocation2 + $0x8] sm:$0xff]
    %v45 = vld [vmem:[#allocation5] sm:$0xff]
    %v46 = vld [vmem:[#allocation5 + $0x8] sm:$0xf]
    %v47 = vld [vmem:[%s2] sm:$0x1]
    %v49 = vlaneseq
    %v50 = vshrl.u32 %v49, 7
    %v51 = vsub.s32 0, %v50
    %v52 = vrot.slane %v47, %v51
    %vm54 = vcmask 97280
    %v56 = vsel %vm54, %v43, 0
    %v59 = vsel %vm54, %v44, 0
    %vm61 = vcmask 1043456
    %v63 = vsel %vm61, %v46, 0
    %65 = vmatprep.subr.mxu0 0.0
    %66 = vmatpush1.msra.mxu0 %v45
    %67 = vmatprep.subr.mxu0 0.0
    %68 = vmatpush1.msra.mxu0 %v63
    %69 = vmatprep.subr.mxu0 0.0
    %70 = vmatpush1.msra.mxu0 0.0
    %71 = vmatprep.subr.mxu0 0.0
    %72 = vmatpush1.msra.mxu0 0.0
    %73 = vmatprep.subr.mxu0 0.0
    %74 = vmatpush1.msra.mxu0 0.0
    %75 = vmatprep.subr.mxu0 0.0
    %76 = vmatpush1.msra.mxu0 0.0
    %77 = vmatprep.subr.mxu0 0.0
    %78 = vmatpush1.msra.mxu0 0.0
    %79 = vmatprep.subr.mxu0 0.0
    %80 = vmatpush1.msra.mxu0 0.0
    %81 = vmatprep.subr.mxu0 0.0
    %82 = vmatpush1.msra.mxu0 0.0
    %83 = vmatprep.subr.mxu0 0.0
    %84 = vmatpush1.msra.mxu0 0.0
    %85 = vmatprep.subr.mxu0 0.0
    %86 = vmatpush1.msra.mxu0 0.0
    %87 = vmatprep.subr.mxu0 0.0
    %88 = vmatpush1.msra.mxu0 0.0
    %89 = vmatprep.subr.mxu0 0.0
    %90 = vmatpush1.msra.mxu0 0.0
    %91 = vmatprep.subr.mxu0 0.0
    %92 = vmatpush1.msra.mxu0 0.0
    %93 = vmatprep.subr.mxu0 0.0
    %94 = vmatpush1.msra.mxu0 0.0
    %95 = vmatprep.subr.mxu0 0.0
    %96 = vmatpush1.msra.mxu0 0.0
    %97 = vmatprep.subr.mxu0 0.0
    %98 = vmatpush1.msra.mxu0 0.0
    %99 = vmatprep.subr.mxu0 0.0
    %100 = vmatpush1.msra.mxu0 0.0
    %101 = vmatprep.subr.mxu0 0.0
    %102 = vmatpush1.msra.mxu0 0.0
    %103 = vmatprep.subr.mxu0 0.0
    %104 = vmatpush1.msra.mxu0 0.0
    %105 = vmatprep.subr.mxu0 0.0
    %106 = vmatpush1.msra.mxu0 0.0
    %107 = vmatprep.subr.mxu0 0.0
    %108 = vmatpush1.msra.mxu0 0.0
    %109 = vmatprep.subr.mxu0 0.0
    %110 = vmatpush1.msra.mxu0 0.0
    %111 = vmatprep.subr.mxu0 0.0
    %112 = vmatpush1.msra.mxu0 0.0
    %113 = vmatprep.subr.mxu0 0.0
    %114 = vmatpush1.msra.mxu0 0.0
    %115 = vmatprep.subr.mxu0 0.0
    %116 = vmatpush1.msra.mxu0 0.0
    %117 = vmatprep.subr.mxu0 0.0
    %118 = vmatpush1.msra.mxu0 0.0
    %119 = vmatprep.subr.mxu0 0.0
    %120 = vmatpush1.msra.mxu0 0.0
    %121 = vmatprep.subr.mxu0 0.0
    %122 = vmatpush1.msra.mxu0 0.0
    %123 = vmatprep.subr.mxu0 0.0
    %124 = vmatpush1.msra.mxu0 0.0
    %125 = vmatprep.subr.mxu0 0.0
    %126 = vmatpush1.msra.mxu0 0.0
    %127 = vmatprep.subr.mxu0 0.0
    %128 = vmatpush1.msra.mxu0 0.0
    %129 = vmatprep.mubr.f32.mxu0 0.0
    %130 = vmatmul.mubr.f32.gmra.mrb[0].mxu0 %v56
    %v131 = vpop.f32.mrb[0].mxu0
    %v132 = vadd.f32 %v52, %v131
    %v133 = vpop.f32.mrb[0].mxu0
    %134 = vmatprep.mubr.f32.mxu0 0.0
    %135 = vmatmul.mubr.f32.gmra.mrb[0].mxu0 %v59
    %v136 = vpop.f32.mrb[0].mxu0
    %v137 = vadd.f32 %v52, %v136
    %v138 = vpop.f32.mrb[0].mxu0
    %139 = vdwg.mxu0
    %140 = vst [vmem:[#allocation7] sm:$0xff] %v132
    %141 = vst [vmem:[#allocation7 + $0x8] sm:$0xff] %v137
    // Predicated region
    $region22: #{tpu_custom_call.1} parent=1 // pred_check
      _
    $region23: #{tpu_custom_call.1} parent=1 // pred_check_branch
      %143 = sbr.rel (0) target = $region25
    $region24: #{tpu_custom_call.1} parent=1 // pred_region
      %s145 = ssub.s32 256, 256
      %146 = vsyncadd [#allocation4], %s145
      %s147 = sshll.u32 [#allocation7], 4
      %s148 = int_to_ptr.vmem [resolvable:$true] %s147
      %153 = dma.vmem_to_hbm [thread:$0]  %s148, 256, %s3, [#allocation4], 128, 128, 8
    $region25: #{tpu_custom_call.1} parent=1 // pred_fallthru
      _
    // Predicated region
    $region26: #{tpu_custom_call.1} parent=1 // pred_check
      _
    $region27: #{tpu_custom_call.1} parent=1 // pred_check_branch
      %155 = sbr.rel (0) target = $region29
    $region28: #{tpu_custom_call.1} parent=1 // pred_region
      %156 = dma.done [#allocation4], 256
    $region29: #{tpu_custom_call.1} parent=1 // pred_fallthru
      _
    %157 = vsyncpa [#allocation3], 1
    %158 = vsyncpa [#allocation6], 1
    %159 = vsyncpa [#allocation4], 1

</llo_original>
